<compile_context>
chip_gen: v5e
topology: v5e:2x2
jax: 0.10.0
libtpu: 0.0.40
codegen_flags: <defaults>
</compile_context>

<pallas_src>
import functools

import jax
import jax.numpy as jnp
from jax.experimental import pallas as pl
from jax.experimental.pallas import tpu as pltpu


# ---------------------------------------------------------------------------
# Phase 1: fused (dilated conv + 1x1 conv) + bias + residual + LeakyReLU,
#          plus packed per-(row, channel) partial sums for BatchNorm.
# ---------------------------------------------------------------------------
def conv_act_stats_kernel(x_ref, w_ref, b_ref, a_ref, st_ref, xp_ref, *,
                          dilation, negative_slope):
    # x_ref  : (1, C, L)     f32   one batch row, read once from HBM
    # w_ref  : (3, C, C)     f32   fused per-tap weights W_eff[k] = W2 @ W1[:,:,k]
    # b_ref  : (C, 1)        f32   fused bias W2 @ b1 + b2
    # a_ref  : (1, C, L)     bf16  pre-BN activation (halved HBM traffic)
    # st_ref : (1, C, 2)     f32   packed [sum, sum-of-squares] per channel
    # xp_ref : (C, L + 2d)   f32   VMEM scratch: zero-padded row
    d = dilation
    _, C, L = x_ref.shape
    x = x_ref[0]                                    # (C, L) f32

    # Build the zero-padded row entirely in VMEM (avoids an HBM pad pass).
    xp_ref[...] = jnp.zeros_like(xp_ref)
    xp_ref[:, d:d + L] = x

    # y[:, t] = sum_k W_eff[k] @ x[:, t + (k-1)*d]   (3 MXU matmuls, f32 acc)
    y = jnp.dot(w_ref[1], x, preferred_element_type=jnp.float32)
    y += jnp.dot(w_ref[0], xp_ref[:, 0:L], preferred_element_type=jnp.float32)
    y += jnp.dot(w_ref[2], xp_ref[:, 2 * d:2 * d + L],
                 preferred_element_type=jnp.float32)

    r = y + b_ref[...] + x                          # bias + residual (f32)
    a = jnp.where(r > 0, r, negative_slope * r)     # LeakyReLU(0.2)

    a_ref[0] = a.astype(a_ref.dtype)                # bf16 intermediate
    # single-pass stats (f32): per-channel sum and sum-of-squares of this row
    st_ref[0, :, 0:1] = jnp.sum(a, axis=1, keepdims=True)
    st_ref[0, :, 1:2] = jnp.sum(a * a, axis=1, keepdims=True)


# ---------------------------------------------------------------------------
# Phase 2: apply the folded BatchNorm affine:  out = a * scale + shift
#          (writes the output directly in the final (N, C, L) layout)
# ---------------------------------------------------------------------------
def bn_apply_kernel(a_ref, scale_ref, shift_ref, o_ref):
    o_ref[0] = (a_ref[0].astype(jnp.float32) * scale_ref[...]
                + shift_ref[...]).astype(o_ref.dtype)


def _pick_lane_tile(length, cap=2048):
    """Largest lane tile <= cap that is a 128-multiple divisor of `length`;
    falls back to a full-length block (always layout-legal)."""
    if length <= cap or length % 128 != 0:
        return length
    t = (cap // 128) * 128
    while t >= 128:
        if length % t == 0:
            return t
        t -= 128
    return length


def _vmem_limit(step_bytes):
    """Scoped-VMEM limit derived from per-step block bytes (double-buffered),
    clipped below v7x's 64 MiB physical VMEM."""
    return int(min(max(4 * step_bytes + (1 << 20), 16 << 20), 56 << 20))


def block_forward(x, w1_torch, b1, w2_torch, b2, gamma, beta, *, dilation,
                  eps=1e-5, negative_slope=0.2):
    """Block forward. x: (N, C, L) float32. Weights in torch layout."""
    N, C, L = x.shape
    d = dilation
    x = x.astype(jnp.float32)

    # ---- algebraic fusion of conv2 into conv1 (exact; tiny XLA matmuls) ----
    w1f = w1_torch.astype(jnp.float32)                 # (out, in, 3)
    w2m = w2_torch[:, :, 0].astype(jnp.float32)        # (out, in)
    w_eff = jnp.einsum('po,oik->kpi', w2m, w1f)        # (3, C, C)
    b_eff = (w2m @ b1.astype(jnp.float32)
             + b2.astype(jnp.float32)).reshape(C, 1)

    # ---- phase 1: conv + act + stats, grid over batch rows --------------
    # TODO(synk): for very long L a single batch row may not fit VMEM; that
    # case needs halo-tiled lane blocks via manual DMA (not done here).
    step1 = C * L * 4 + C * L * 2 + C * (L + 2 * d) * 4 + 3 * C * C * 4
    cparams1 = pltpu.CompilerParams(
        dimension_semantics=("parallel",),             # rows independent (megacore)
        vmem_limit_bytes=_vmem_limit(step1),
    )
    kernel1 = functools.partial(conv_act_stats_kernel, dilation=d,
                                negative_slope=negative_slope)
    a, stats = pl.pallas_call(
        kernel1,
        grid=(N,),
        in_specs=[
            pl.BlockSpec((1, C, L), lambda n: (n, 0, 0)),   # x row (f32, read once)
            pl.BlockSpec((3, C, C), lambda n: (0, 0, 0)),   # fused weights (resident)
            pl.BlockSpec((C, 1), lambda n: (0, 0)),         # fused bias (resident)
        ],
        out_specs=[
            pl.BlockSpec((1, C, L), lambda n: (n, 0, 0)),   # pre-BN activation (bf16)
            pl.BlockSpec((1, C, 2), lambda n: (n, 0, 0)),   # packed per-row stats
        ],
        out_shape=[
            jax.ShapeDtypeStruct((N, C, L), jnp.bfloat16),
            jax.ShapeDtypeStruct((N, C, 2), jnp.float32),
        ],
        scratch_shapes=[pltpu.VMEM((C, L + 2 * d), jnp.float32)],
        compiler_params=cparams1,
    )(x, w_eff, b_eff)

    # ---- tiny per-channel stats reduction + BN affine folding (XLA glue) ----
    cnt = jnp.float32(N * L)
    mean = jnp.sum(stats[:, :, 0], axis=0) / cnt
    ex2 = jnp.sum(stats[:, :, 1], axis=0) / cnt
    var = jnp.maximum(ex2 - mean * mean, 0.0)          # biased (training-mode)
    inv = jax.lax.rsqrt(var + eps)
    g = gamma.astype(jnp.float32)
    scale = (g * inv).reshape(C, 1)
    shift = (beta.astype(jnp.float32) - mean * g * inv).reshape(C, 1)
    # TODO(synk): BatchNorm1d running_mean/running_var updates (training-time
    # side effect) are not produced; only the normalized output is returned.

    # ---- phase 2: out = a*scale + shift, written directly in (N, C, L) ----
    T = _pick_lane_tile(L)
    step2 = C * T * 2 + C * T * 4 + 2 * C * 4
    cparams2 = pltpu.CompilerParams(
        dimension_semantics=("parallel", "parallel"),
        vmem_limit_bytes=_vmem_limit(step2),
    )
    out = pl.pallas_call(
        bn_apply_kernel,
        grid=(N, L // T),
        in_specs=[
            pl.BlockSpec((1, C, T), lambda n, j: (n, 0, j)),
            pl.BlockSpec((C, 1), lambda n, j: (0, 0)),
            pl.BlockSpec((C, 1), lambda n, j: (0, 0)),
        ],
        out_specs=pl.BlockSpec((1, C, T), lambda n, j: (n, 0, j)),
        out_shape=jax.ShapeDtypeStruct((N, C, L), x.dtype),
        compiler_params=cparams2,
    )(a, scale, shift)
    return out


def block_reference(x, w1_torch, b1, w2_torch, b2, gamma, beta, *, dilation,
                    eps=1e-5, negative_slope=0.2):
    """Independent pure-JAX reference (matches PyTorch training-mode forward)."""
    dn = jax.lax.conv_dimension_numbers(x.shape, w1_torch.shape,
                                        ('NCH', 'OIH', 'NCH'))
    y1 = jax.lax.conv_general_dilated(
        x, w1_torch, window_strides=(1,), padding=[(dilation, dilation)],
        rhs_dilation=(dilation,), dimension_numbers=dn) + b1[None, :, None]
    y2 = jax.lax.conv_general_dilated(
        y1, w2_torch, window_strides=(1,), padding=[(0, 0)],
        dimension_numbers=dn) + b2[None, :, None]
    r = y2 + x
    a = jnp.where(r > 0, r, negative_slope * r)
    mean = jnp.mean(a, axis=(0, 2), keepdims=True)
    var = jnp.mean((a - mean) ** 2, axis=(0, 2), keepdims=True)
    return (a - mean) * jax.lax.rsqrt(var + eps) * gamma[None, :, None] \
        + beta[None, :, None]


if __name__ == "__main__":
    N, C, L = 2, 8, 128
    dilation = 2

    key = jax.random.PRNGKey(0)
    kx, k1, k2, k3, k4 = jax.random.split(key, 5)

    x = jax.random.normal(kx, (N, C, L), dtype=jnp.float32)

    # deterministic parameter init (PyTorch-style uniform bounds)
    bound1 = 1.0 / jnp.sqrt(C * 3.0)
    w1 = jax.random.uniform(k1, (C, C, 3), jnp.float32, -bound1, bound1)
    b1 = jax.random.uniform(k2, (C,), jnp.float32, -bound1, bound1)
    bound2 = 1.0 / jnp.sqrt(C * 1.0)
    w2 = jax.random.uniform(k3, (C, C, 1), jnp.float32, -bound2, bound2)
    b2 = jax.random.uniform(k4, (C,), jnp.float32, -bound2, bound2)
    gamma = jnp.ones((C,), jnp.float32)
    beta = jnp.zeros((C,), jnp.float32)

    out = block_forward(x, w1, b1, w2, b2, gamma, beta, dilation=dilation)
    out = jax.block_until_ready(out)

    ref = block_reference(x, w1, b1, w2, b2, gamma, beta, dilation=dilation)
    assert out.shape == (N, C, L)
    # bf16 storage of the pre-BN intermediate (per perf review) => bf16-level
    # tolerance vs the all-f32 reference.
    assert jnp.allclose(out, ref, atol=3e-2, rtol=3e-2), \
        float(jnp.max(jnp.abs(out - ref)))

    print("KERNEL_OK")
</pallas_src>

<mosaic_0001>
module attributes {stable_mosaic.version = 11 : i64} {
  func.func @conv_act_stats_kernel(%arg0: i32, %arg1: memref<1x8x128xf32, #tpu.memory_space<vmem>>, %arg2: memref<3x8x8xf32, #tpu.memory_space<vmem>>, %arg3: memref<8x1xf32, #tpu.memory_space<vmem>>, %arg4: memref<1x8x128xbf16, #tpu.memory_space<vmem>>, %arg5: memref<1x8x2xf32, #tpu.memory_space<vmem>>, %arg6: memref<8x132xf32, #tpu.memory_space<vmem>>) attributes {dimension_semantics = [#tpu.dimension_semantics<parallel>], iteration_bounds = array<i64: 2>, scalar_prefetch = 0 : i64, scratch_operands = 1 : i64, tpu.core_type = #tpu.core_type<tc>, window_params = [{transform_indices = @transform_0, window_bounds = array<i64: 1, 8, 128>}, {pipeline_mode = #tpu.pipeline_mode<synchronous>, transform_indices = @transform_1, window_bounds = array<i64: 3, 8, 8>}, {pipeline_mode = #tpu.pipeline_mode<synchronous>, transform_indices = @transform_2, window_bounds = array<i64: 8, 1>}, {transform_indices = @transform_3, window_bounds = array<i64: 1, 8, 128>}, {transform_indices = @transform_4, window_bounds = array<i64: 1, 8, 2>}]} {
    %c0 = arith.constant 0 : index
    %c0_0 = arith.constant 0 : index
    %c0_1 = arith.constant 0 : index
    %0 = vector.load %arg1[%c0, %c0_0, %c0_1] : memref<1x8x128xf32, #tpu.memory_space<vmem>>, vector<1x8x128xf32>
    %1 = vector.shape_cast %0 : vector<1x8x128xf32> to vector<8x128xf32>
    %cst = arith.constant 0.000000e+00 : f32
    %2 = vector.broadcast %cst : f32 to vector<8x132xf32>
    %c0_2 = arith.constant 0 : index
    %c0_3 = arith.constant 0 : index
    %3 = vector.load %arg6[%c0_2, %c0_3] : memref<8x132xf32, #tpu.memory_space<vmem>>, vector<8x132xf32>
    tpu.vector_store %arg6[%c0_2, %c0_3], %2 {strides = array<i32>} : memref<8x132xf32, #tpu.memory_space<vmem>>, vector<8x132xf32>,
    %c0_4 = arith.constant 0 : index
    %c2 = arith.constant 2 : index
    %4 = vector.load %arg6[%c0_4, %c2] : memref<8x132xf32, #tpu.memory_space<vmem>>, vector<8x128xf32>
    tpu.vector_store %arg6[%c0_4, %c2], %1 {strides = array<i32>} : memref<8x132xf32, #tpu.memory_space<vmem>>, vector<8x128xf32>,
    %c1 = arith.constant 1 : index
    %c0_5 = arith.constant 0 : index
    %c0_6 = arith.constant 0 : index
    %5 = vector.load %arg2[%c1, %c0_5, %c0_6] : memref<3x8x8xf32, #tpu.memory_space<vmem>>, vector<1x8x8xf32>
    %6 = vector.shape_cast %5 : vector<1x8x8xf32> to vector<8x8xf32>
    %cst_7 = arith.constant dense<0.000000e+00> : vector<8x128xf32>
    %7 = tpu.matmul %6, %1, %cst_7 {dimension_numbers = #tpu.dot_dimension_numbers<[1], [0], [0], [1], [0, 0, 1, 1], [], []>} : vector<8x8xf32>, vector<8x128xf32>, vector<8x128xf32> -> vector<8x128xf32>
    %c0_8 = arith.constant 0 : index
    %c0_9 = arith.constant 0 : index
    %c0_10 = arith.constant 0 : index
    %8 = vector.load %arg2[%c0_8, %c0_9, %c0_10] : memref<3x8x8xf32, #tpu.memory_space<vmem>>, vector<1x8x8xf32>
    %9 = vector.shape_cast %8 : vector<1x8x8xf32> to vector<8x8xf32>
    %c0_11 = arith.constant 0 : index
    %c0_12 = arith.constant 0 : index
    %10 = vector.load %arg6[%c0_11, %c0_12] : memref<8x132xf32, #tpu.memory_space<vmem>>, vector<8x128xf32>
    %cst_13 = arith.constant dense<0.000000e+00> : vector<8x128xf32>
    %11 = tpu.matmul %9, %10, %cst_13 {dimension_numbers = #tpu.dot_dimension_numbers<[1], [0], [0], [1], [0, 0, 1, 1], [], []>} : vector<8x8xf32>, vector<8x128xf32>, vector<8x128xf32> -> vector<8x128xf32>
    %12 = arith.addf %7, %11 : vector<8x128xf32>
    %c2_14 = arith.constant 2 : index
    %c0_15 = arith.constant 0 : index
    %c0_16 = arith.constant 0 : index
    %13 = vector.load %arg2[%c2_14, %c0_15, %c0_16] : memref<3x8x8xf32, #tpu.memory_space<vmem>>, vector<1x8x8xf32>
    %14 = vector.shape_cast %13 : vector<1x8x8xf32> to vector<8x8xf32>
    %c0_17 = arith.constant 0 : index
    %c4 = arith.constant 4 : index
    %15 = vector.load %arg6[%c0_17, %c4] : memref<8x132xf32, #tpu.memory_space<vmem>>, vector<8x128xf32>
    %cst_18 = arith.constant dense<0.000000e+00> : vector<8x128xf32>
    %16 = tpu.matmul %14, %15, %cst_18 {dimension_numbers = #tpu.dot_dimension_numbers<[1], [0], [0], [1], [0, 0, 1, 1], [], []>} : vector<8x8xf32>, vector<8x128xf32>, vector<8x128xf32> -> vector<8x128xf32>
    %17 = arith.addf %12, %16 : vector<8x128xf32>
    %c0_19 = arith.constant 0 : index
    %c0_20 = arith.constant 0 : index
    %18 = vector.load %arg3[%c0_19, %c0_20] : memref<8x1xf32, #tpu.memory_space<vmem>>, vector<8x1xf32>
    %19 = vector.broadcast %18 : vector<8x1xf32> to vector<8x128xf32>
    %20 = arith.addf %17, %19 : vector<8x128xf32>
    %21 = arith.addf %20, %1 : vector<8x128xf32>
    %cst_21 = arith.constant 0.000000e+00 : f32
    %22 = vector.broadcast %cst_21 : f32 to vector<8x128xf32>
    %23 = arith.cmpf ogt, %21, %22 : vector<8x128xf32>
    %cst_22 = arith.constant 2.000000e-01 : f32
    %24 = vector.broadcast %cst_22 : f32 to vector<8x128xf32>
    %25 = arith.mulf %24, %21 : vector<8x128xf32>
    %26 = arith.select %23, %21, %25 : vector<8x128xi1>, vector<8x128xf32>
    %27 = arith.truncf %26 : vector<8x128xf32> to vector<8x128xbf16>
    %c0_23 = arith.constant 0 : index
    %c0_24 = arith.constant 0 : index
    %c0_25 = arith.constant 0 : index
    %28 = vector.load %arg4[%c0_23, %c0_24, %c0_25] : memref<1x8x128xbf16, #tpu.memory_space<vmem>>, vector<1x8x128xbf16>
    %29 = vector.shape_cast %28 : vector<1x8x128xbf16> to vector<8x128xbf16>
    %30 = vector.shape_cast %27 : vector<8x128xbf16> to vector<1x8x128xbf16>
    tpu.vector_store %arg4[%c0_23, %c0_24, %c0_25], %30 {strides = array<i32>} : memref<1x8x128xbf16, #tpu.memory_space<vmem>>, vector<1x8x128xbf16>,
    %cst_26 = arith.constant dense<0.000000e+00> : vector<8xf32>
    %31 = vector.multi_reduction <add>, %26, %cst_26 [1] : vector<8x128xf32> to vector<8xf32>
    %32 = vector.shape_cast %31 : vector<8xf32> to vector<8x1xf32>
    %c0_27 = arith.constant 0 : index
    %c0_28 = arith.constant 0 : index
    %c0_29 = arith.constant 0 : index
    %33 = vector.load %arg5[%c0_27, %c0_28, %c0_29] : memref<1x8x2xf32, #tpu.memory_space<vmem>>, vector<1x8x1xf32>
    %34 = vector.shape_cast %33 : vector<1x8x1xf32> to vector<8x1xf32>
    %35 = vector.shape_cast %32 : vector<8x1xf32> to vector<1x8x1xf32>
    tpu.vector_store %arg5[%c0_27, %c0_28, %c0_29], %35 {strides = array<i32>} : memref<1x8x2xf32, #tpu.memory_space<vmem>>, vector<1x8x1xf32>,
    %36 = arith.mulf %26, %26 : vector<8x128xf32>
    %cst_30 = arith.constant dense<0.000000e+00> : vector<8xf32>
    %37 = vector.multi_reduction <add>, %36, %cst_30 [1] : vector<8x128xf32> to vector<8xf32>
    %38 = vector.shape_cast %37 : vector<8xf32> to vector<8x1xf32>
    %c0_31 = arith.constant 0 : index
    %c0_32 = arith.constant 0 : index
    %c1_33 = arith.constant 1 : index
    %39 = vector.load %arg5[%c0_31, %c0_32, %c1_33] : memref<1x8x2xf32, #tpu.memory_space<vmem>>, vector<1x8x1xf32>
    %40 = vector.shape_cast %39 : vector<1x8x1xf32> to vector<8x1xf32>
    %41 = vector.shape_cast %38 : vector<8x1xf32> to vector<1x8x1xf32>
    tpu.vector_store %arg5[%c0_31, %c0_32, %c1_33], %41 {strides = array<i32>} : memref<1x8x2xf32, #tpu.memory_space<vmem>>, vector<1x8x1xf32>,
    return
  }
  func.func @transform_0(%arg0: i32) -> (i32, i32, i32) {
    %c0_i32 = arith.constant 0 : i32
    %c0_i32_0 = arith.constant 0 : i32
    %c0_i32_1 = arith.constant 0 : i32
    return %arg0, %c0_i32, %c0_i32_0 : i32, i32, i32
  }
  func.func @transform_1(%arg0: i32) -> (i32, i32, i32) {
    %c0_i32 = arith.constant 0 : i32
    %c0_i32_0 = arith.constant 0 : i32
    %c0_i32_1 = arith.constant 0 : i32
    %c0_i32_2 = arith.constant 0 : i32
    return %c0_i32, %c0_i32_0, %c0_i32_1 : i32, i32, i32
  }
  func.func @transform_2(%arg0: i32) -> (i32, i32) {
    %c0_i32 = arith.constant 0 : i32
    %c0_i32_0 = arith.constant 0 : i32
    %c0_i32_1 = arith.constant 0 : i32
    return %c0_i32, %c0_i32_0 : i32, i32
  }
  func.func @transform_3(%arg0: i32) -> (i32, i32, i32) {
    %c0_i32 = arith.constant 0 : i32
    %c0_i32_0 = arith.constant 0 : i32
    %c0_i32_1 = arith.constant 0 : i32
    return %arg0, %c0_i32, %c0_i32_0 : i32, i32, i32
  }
  func.func @transform_4(%arg0: i32) -> (i32, i32, i32) {
    %c0_i32 = arith.constant 0 : i32
    %c0_i32_0 = arith.constant 0 : i32
    %c0_i32_1 = arith.constant 0 : i32
    return %arg0, %c0_i32, %c0_i32_0 : i32, i32, i32
  }
}

</mosaic_0001>

<llo_original>
// kernel: tpu_custom_call.1
$region0: #{tpu_custom_call.1}
  #allocation0 [shape = 'u32[]', space=smem, size = 0x4, offset = 0x4, fixed_abs, tag = 'smem constant byte address 0x4 - core index']
  #allocation1 [shape = 'u32[72,128]{1,0:T(1,128)}', space=vmem, size = 0x9000, scoped, tag = 'internal scratch']
  #allocation2 [shape = 'f32[8,132]{1,0:T(8,128)}', space=vmem, size = 0x2000, scoped, tag = 'scratch operand']
  %s0 = inlined_call_operand.hbm [shape: f32[2,8,128], index: 0, kind: input, shape index: {}]
  %s1 = inlined_call_operand.hbm [shape: f32[3,8,8], index: 1, kind: input, shape index: {}]
  %s2 = inlined_call_operand.vmem [shape: f32[8,1], index: 2, kind: input, shape index: {}]
  %s3 = inlined_call_operand.hbm [shape: bf16[2,8,128], index: 3, kind: output, shape index: {0}]
  %s4 = inlined_call_operand.vmem [shape: f32[2,8,2], index: 4, kind: output, shape index: {1}]
  %5 = xla_tuple %s3, %s4
  %s6 = sld [smem:[#allocation0]]
  $region61: #{tpu_custom_call.1} parent=0
    _
  %s8 = ssub.s32 1, %s6
  %s9 = scalar_select 0, %s8, %s6
  $region1: #{tpu_custom_call.1} parent=0
    #allocation3 [shape = 'u8[8192]{0}', space=vmem, size = 0x2000, scoped, tag = 'input window, operand 0']
    #allocation4 [shape = 's32[2]{0}', space=sflag, size = 0x8, scoped, tag = 'scoped memory for tpu_custom_call.1']
    #allocation5 [shape = 's32[2]{0}', space=sflag, size = 0x8, scoped, tag = 'scoped memory for tpu_custom_call.1']
    #allocation6 [shape = 'u8[12288]{0}', space=vmem, size = 0x3000, scoped, tag = 'input window, operand 1, single buffered']
    #allocation7 [shape = 's32[1]{0}', space=sflag, size = 0x4, scoped, tag = 'scoped memory for tpu_custom_call.1']
    #allocation8 [shape = 'u8[4096]{0}', space=vmem, size = 0x1000, scoped, tag = 'output window, operand 0']
    %10 = vsyncpa [#allocation4], 0
    %s11 = scalar_lea.sflag [#allocation4], 1
    %12 = vsyncpa %s11, 0
    %13 = vsyncpa [#allocation7], 0
    %14 = vsyncpa [#allocation5], 0
    %s15 = scalar_lea.sflag [#allocation5], 1
    %16 = vsyncpa %s15, 0
    loop: start=0, step=1, limit=4
    $region2: #{tpu_custom_call.1} parent=1 // loop_pre_header
      _
    $region3: #{tpu_custom_call.1} parent=1 // loop_header
      %s18 = sphi 0, %s22
      %p19 = scmp.ge.s32.totalorder %s18, 4
      %s28 = sphi 0, %s30
      %s31 = sphi 0, %s28
      %s32 = sphi 0, %s31
      %s48 = sphi 0, %s32
      %s52 = sphi 0, %s52
      %s54 = sphi 0, %s52
      %s55 = sphi 0, %s54
      %s69 = sphi 0, %s55
      %s73 = sphi 0, %s73
      %s75 = sphi 0, %s73
      %s76 = sphi 0, %s75
      %s90 = sphi 0, %s76
      %s96 = sphi 0, %s98
      %s99 = sphi 0, %s96
      %s100 = sphi 0, %s99
      %s116 = sphi 0, %s100
      %s122 = sphi 0, %s124
      %s125 = sphi 0, %s122
      %s126 = sphi 0, %s125
      %s142 = sphi 0, %s126
    $region4: #{tpu_custom_call.1} parent=1 // loop_header_branch
      %21 = sbr.rel (%p19) target = $region8
    $region5: #{tpu_custom_call.1} parent=1 // loop_body
      %s23 = ssub.s32 %s18, 1
      %s24 = ssub.s32 %s18, 2
      %s25 = sadd.s32 %s18, 1
      %s26 = ssub.s32 %s18, %s25
      %p27 = scmp.eq.s32.totalorder %s26, 0
      %s29 = sadd.s32 %s28, 1
      %s30 = scalar_select %p27, %s28, %s29
      %p33 = pneg %p27
      %p34 = scmp.eq.s32.totalorder %s18, 1
      %p35 = por %p33, %p34
      %p36 = scmp.ne.s32.totalorder %s28, %s31
      %p37 = scmp.eq.s32.totalorder %s18, 0
      %p38 = por %p36, %p37
      %p39 = scmp.ne.s32.totalorder %s28, %s31
      %p40 = scmp.eq.s32.totalorder %s23, 1
      %p41 = por %p39, %p40
      %p42 = scmp.ne.s32.totalorder %s31, %s32
      %p43 = scmp.eq.s32.totalorder %s23, 0
      %p44 = por %p42, %p43
      %p45 = scmp.ne.s32.totalorder %s31, %s32
      %p46 = scmp.eq.s32.totalorder %s24, 1
      %p47 = por %p45, %p46
      %p49 = scmp.ne.s32.totalorder %s32, %s48
      %p50 = scmp.eq.s32.totalorder %s24, 0
      %p51 = por %p49, %p50
      %s53 = sadd.s32 %s52, 1
      %p56 = scmp.eq.s32.totalorder %s18, 1
      %p57 = scmp.ne.s32.totalorder %s52, %s54
      %p58 = scmp.eq.s32.totalorder %s18, 0
      %p59 = por %p57, %p58
      %p60 = scmp.ne.s32.totalorder %s52, %s54
      %p61 = scmp.eq.s32.totalorder %s23, 1
      %p62 = por %p60, %p61
      %p63 = scmp.ne.s32.totalorder %s54, %s55
      %p64 = scmp.eq.s32.totalorder %s23, 0
      %p65 = por %p63, %p64
      %p66 = scmp.ne.s32.totalorder %s54, %s55
      %p67 = scmp.eq.s32.totalorder %s24, 1
      %p68 = por %p66, %p67
      %p70 = scmp.ne.s32.totalorder %s55, %s69
      %p71 = scmp.eq.s32.totalorder %s24, 0
      %p72 = por %p70, %p71
      %s74 = sadd.s32 %s73, 1
      %p77 = scmp.eq.s32.totalorder %s18, 1
      %p78 = scmp.ne.s32.totalorder %s73, %s75
      %p79 = scmp.eq.s32.totalorder %s18, 0
      %p80 = por %p78, %p79
      %p81 = scmp.ne.s32.totalorder %s73, %s75
      %p82 = scmp.eq.s32.totalorder %s23, 1
      %p83 = por %p81, %p82
      %p84 = scmp.ne.s32.totalorder %s75, %s76
      %p85 = scmp.eq.s32.totalorder %s23, 0
      %p86 = por %p84, %p85
      %p87 = scmp.ne.s32.totalorder %s75, %s76
      %p88 = scmp.eq.s32.totalorder %s24, 1
      %p89 = por %p87, %p88
      %p91 = scmp.ne.s32.totalorder %s76, %s90
      %p92 = scmp.eq.s32.totalorder %s24, 0
      %p93 = por %p91, %p92
      %s94 = ssub.s32 %s18, %s25
      %p95 = scmp.eq.s32.totalorder %s94, 0
      %s97 = sadd.s32 %s96, 1
      %s98 = scalar_select %p95, %s96, %s97
      %p101 = pneg %p95
      %p102 = scmp.eq.s32.totalorder %s18, 1
      %p103 = por %p101, %p102
      %p104 = scmp.ne.s32.totalorder %s96, %s99
      %p105 = scmp.eq.s32.totalorder %s18, 0
      %p106 = por %p104, %p105
      %p107 = scmp.ne.s32.totalorder %s96, %s99
      %p108 = scmp.eq.s32.totalorder %s23, 1
      %p109 = por %p107, %p108
      %p110 = scmp.ne.s32.totalorder %s99, %s100
      %p111 = scmp.eq.s32.totalorder %s23, 0
      %p112 = por %p110, %p111
      %p113 = scmp.ne.s32.totalorder %s99, %s100
      %p114 = scmp.eq.s32.totalorder %s24, 1
      %p115 = por %p113, %p114
      %p117 = scmp.ne.s32.totalorder %s100, %s116
      %p118 = scmp.eq.s32.totalorder %s24, 0
      %p119 = por %p117, %p118
      %s120 = ssub.s32 %s18, %s25
      %p121 = scmp.eq.s32.totalorder %s120, 0
      %s123 = sadd.s32 %s122, 1
      %s124 = scalar_select %p121, %s122, %s123
      %p127 = pneg %p121
      %p128 = scmp.eq.s32.totalorder %s18, 1
      %p129 = por %p127, %p128
      %p130 = scmp.ne.s32.totalorder %s122, %s125
      %p131 = scmp.eq.s32.totalorder %s18, 0
      %p132 = por %p130, %p131
      %p133 = scmp.ne.s32.totalorder %s122, %s125
      %p134 = scmp.eq.s32.totalorder %s23, 1
      %p135 = por %p133, %p134
      %p136 = scmp.ne.s32.totalorder %s125, %s126
      %p137 = scmp.eq.s32.totalorder %s23, 0
      %p138 = por %p136, %p137
      %p139 = scmp.ne.s32.totalorder %s125, %s126
      %p140 = scmp.eq.s32.totalorder %s24, 1
      %p141 = por %p139, %p140
      %p143 = scmp.ne.s32.totalorder %s126, %s142
      %p144 = scmp.eq.s32.totalorder %s24, 0
      %p145 = por %p143, %p144
      %p146 = scmp.le.s32.totalorder 1, %s18
      %p147 = scmp.lt.s32.totalorder %s18, 3
      %p148 = pnand %p146, %p147
      %p149 = pneg %p148
      // Predicated region
      $region9: #{tpu_custom_call.1} parent=5 // pred_check
        _
      $region10: #{tpu_custom_call.1} parent=5 // pred_check_branch
        %151 = sbr.rel (%p148) target = $region12
      $region11: #{tpu_custom_call.1} parent=5 // pred_region
        %s152 = ssub.s32 %s18, 1
        // Predicated region
        $region13: #{tpu_custom_call.1} parent=11 // pred_check
          %p153 = pneg %p65
        $region14: #{tpu_custom_call.1} parent=11 // pred_check_branch
          %155 = sbr.rel (%p153) target = $region16
        $region15: #{tpu_custom_call.1} parent=11 // pred_region
          %157 = vsyncadd [#allocation7], 0
          %s158 = sshll.u32 %s1, 4
          %s159 = int_to_ptr.hbm [resolvable:$true] %s158
          %s160 = sshll.u32 [#allocation6], 4
          %s161 = int_to_ptr.vmem [resolvable:$true] %s160
          %166 = dma.hbm_to_vmem [thread:$0]  %s159, 384, %s161, [#allocation7], 128, 128, 8
        $region16: #{tpu_custom_call.1} parent=11 // pred_fallthru
          _
        // Predicated region
        $region17: #{tpu_custom_call.1} parent=11 // pred_check
          %p167 = pneg %p86
        $region18: #{tpu_custom_call.1} parent=11 // pred_check_branch
          %169 = sbr.rel (%p167) target = $region20
        $region19: #{tpu_custom_call.1} parent=11 // pred_region
          _
        $region20: #{tpu_custom_call.1} parent=11 // pred_fallthru
          _
      $region12: #{tpu_custom_call.1} parent=5 // pred_fallthru
        _
      %p170 = scmp.lt.s32.totalorder %s18, 2
      // Predicated region
      $region21: #{tpu_custom_call.1} parent=5 // pred_check
        %p171 = pneg %p170
      $region22: #{tpu_custom_call.1} parent=5 // pred_check_branch
        %173 = sbr.rel (%p171) target = $region24
      $region23: #{tpu_custom_call.1} parent=5 // pred_region
        // Predicated region
        $region25: #{tpu_custom_call.1} parent=23 // pred_check
          %p174 = pneg %p38
        $region26: #{tpu_custom_call.1} parent=23 // pred_check_branch
          %176 = sbr.rel (%p174) target = $region28
        $region27: #{tpu_custom_call.1} parent=23 // pred_region
          %s177 = sand.u32 %s28, 1
          %s178 = scalar_lea.sflag [#allocation4], %s177
          %s179 = sand.u32 %s28, 1
          %s180 = smul.addr %s179, 8
          %s181 = scalar_lea.vmem [#allocation3], %s180
          %183 = vsyncadd %s178, 0
          %s184 = smul.addr %s18, 8
          %s185 = scalar_lea.hbm %s0, %s184
          %s187 = sshll.u32 %s185, 4
          %s188 = int_to_ptr.hbm [resolvable:$true] %s187
          %s189 = sshll.u32 %s181, 4
          %s190 = int_to_ptr.vmem [resolvable:$true] %s189
          %192 = dma.hbm_to_vmem [thread:$0]  %s188, 128, %s190, %s178
        $region28: #{tpu_custom_call.1} parent=23 // pred_fallthru
          _
      $region24: #{tpu_custom_call.1} parent=5 // pred_fallthru
        _
      %p193 = scmp.le.s32.totalorder 1, %s18
      %p194 = scmp.lt.s32.totalorder %s18, 3
      %p195 = pnand %p193, %p194
      %p196 = pneg %p195
      // Predicated region
      $region29: #{tpu_custom_call.1} parent=5 // pred_check
        _
      $region30: #{tpu_custom_call.1} parent=5 // pred_check_branch
        %198 = sbr.rel (%p195) target = $region32
      $region31: #{tpu_custom_call.1} parent=5 // pred_region
        %s199 = ssub.s32 %s18, 1
        %s200 = sand.u32 %s31, 1
        %s201 = scalar_lea.sflag [#allocation4], %s200
        %s202 = sand.u32 %s31, 1
        %s203 = smul.addr %s202, 8
        %s204 = scalar_lea.vmem [#allocation3], %s203
        // Predicated region
        $region33: #{tpu_custom_call.1} parent=31 // pred_check
          %p205 = pneg %p44
        $region34: #{tpu_custom_call.1} parent=31 // pred_check_branch
          %207 = sbr.rel (%p205) target = $region36
        $region35: #{tpu_custom_call.1} parent=31 // pred_region
          %209 = dma.done %s201, 128
        $region36: #{tpu_custom_call.1} parent=31 // pred_fallthru
          _
        // Predicated region
        $region37: #{tpu_custom_call.1} parent=31 // pred_check
          %p210 = pneg %p65
        $region38: #{tpu_custom_call.1} parent=31 // pred_check_branch
          %212 = sbr.rel (%p210) target = $region40
        $region39: #{tpu_custom_call.1} parent=31 // pred_region
          %214 = dma.done [#allocation7], 384
        $region40: #{tpu_custom_call.1} parent=31 // pred_fallthru
          _
        %s215 = sand.u32 %s31, 1
        %s216 = scalar_lea.sflag [#allocation4], %s215
        %s217 = sand.u32 %s31, 1
        %s218 = smul.addr %s217, 8
        %s219 = scalar_lea.vmem [#allocation3], %s218
        %p220 = pneg %p44
        %p221 = pneg %p41
        %p222 = pneg %p65
        %p223 = pneg %p62
        %p224 = pneg %p86
        %p225 = pneg %p83
        %p226 = pneg %p112
        %p227 = pneg %p109
        %s228 = sand.u32 %s99, 1
        %s229 = scalar_lea.sflag [#allocation5], %s228
        %s230 = sand.u32 %s99, 1
        %s231 = smul.addr %s230, 4
        %s232 = scalar_lea.vmem [#allocation8], %s231
        %p233 = pneg %p138
        %p234 = pneg %p135
        %p235 = scmp.lt.s32.totalorder %s23, 1
        %s236 = scalar_select %p235, %s23, 1
        %s237 = smul.addr %s236, 8
        %s238 = scalar_lea.vmem %s4, %s237
        %p239 = scmp.lt.s32.totalorder %s23, 1
        %s240 = scalar_select %p239, %s23, 1
        %s241 = smul.addr %s240, 8
        %s242 = scalar_lea.vmem %s4, %s241
        %v243 = vld [vmem:[%s204] sm:$0xff]
        %244 = vst [vmem:[#allocation2] sm:$0xff] 0.0
        %vm245 = vcmask 31744
        %246 = vst.msk [vmem:[#allocation2 + $0x8] sm:$0xff] %vm245, 0.0
        %248 = vrot.lane.b32.xlu0 %v243, 2
        %v249 = vpop.permute.xlu0 %248
        %vm251 = vcmask 1047568
        %252 = vst.msk [vmem:[#allocation2] sm:$0xff] %vm251, %v249
        %vm253 = vcmask 15360
        %254 = vst.msk [vmem:[#allocation2 + $0x8] sm:$0xff] %vm253, %v249
        %s255 = scalar_lea.vmem [#allocation6], 8
        %v256 = vld [vmem:[%s255] sm:$0xff]
        %v257 = vld [vmem:[#allocation6] sm:$0xff]
        %v258 = vld [vmem:[#allocation2] sm:$0xff]
        %vm259 = vcmask 64512
        %v261 = vsel %vm259, %v257, 0
        %263 = vmatpush.msra.mxu0 0.0
        %264 = vmatpush.msra.mxu0 0.0
        %265 = vmatpush.msra.mxu0 0.0
        %266 = vmatpush.msra.mxu0 0.0
        %267 = vmatpush.msra.mxu0 0.0
        %268 = vmatpush.msra.mxu0 0.0
        %269 = vmatpush.msra.mxu0 0.0
        %270 = vmatpush.msra.mxu0 0.0
        %271 = vmatpush.msra.mxu0 0.0
        %272 = vmatpush.msra.mxu0 0.0
        %273 = vmatpush.msra.mxu0 0.0
        %274 = vmatpush.msra.mxu0 0.0
        %275 = vmatpush.msra.mxu0 0.0
        %276 = vmatpush.msra.mxu0 0.0
        %277 = vmatpush.msra.mxu0 0.0
        %278 = vmatpush.msra.mxu0 %v258
        %279 = vmatmul.f32.gmra.mxu0 %v261
        %v280 = vpop.f32.mrf.mxu0
        %v281 = vadd.f32 0.0, %v280
        %282 = vdwg.mxu0
        %v284 = vsel %vm259, %v256, 0
        %286 = vmatpush.msra.mxu0 0.0
        %287 = vmatpush.msra.mxu0 0.0
        %288 = vmatpush.msra.mxu0 0.0
        %289 = vmatpush.msra.mxu0 0.0
        %290 = vmatpush.msra.mxu0 0.0
        %291 = vmatpush.msra.mxu0 0.0
        %292 = vmatpush.msra.mxu0 0.0
        %293 = vmatpush.msra.mxu0 0.0
        %294 = vmatpush.msra.mxu0 0.0
        %295 = vmatpush.msra.mxu0 0.0
        %296 = vmatpush.msra.mxu0 0.0
        %297 = vmatpush.msra.mxu0 0.0
        %298 = vmatpush.msra.mxu0 0.0
        %299 = vmatpush.msra.mxu0 0.0
        %300 = vmatpush.msra.mxu0 0.0
        %301 = vmatpush.msra.mxu0 %v243
        %302 = vmatmul.f32.gmra.mxu0 %v284
        %v303 = vpop.f32.mrf.mxu0
        %v304 = vadd.f32 %v281, %v303
        %305 = vdwg.mxu0
        %s306 = scalar_lea.vmem [#allocation6], 16
        %v307 = vld [vmem:[%s306] sm:$0xff]
        %v308 = vld [vmem:[#allocation2] sm:$0xff]
        %v309 = vld [vmem:[#allocation2 + $0x8] sm:$0xff]
        %312 = vrot.lane.b32.xlu0 %v308, 124
        %v313 = vpop.permute.xlu0 %312
        %314 = vrot.lane.b32.xlu0 %v309, 124
        %v315 = vpop.permute.xlu0 %314
        %vm316 = vcmask 1014784
        %v317 = vsel %vm316, %v313, %v315
        %v320 = vsel %vm259, %v307, 0
        %322 = vmatpush.msra.mxu0 0.0
        %323 = vmatpush.msra.mxu0 0.0
        %324 = vmatpush.msra.mxu0 0.0
        %325 = vmatpush.msra.mxu0 0.0
        %326 = vmatpush.msra.mxu0 0.0
        %327 = vmatpush.msra.mxu0 0.0
        %328 = vmatpush.msra.mxu0 0.0
        %329 = vmatpush.msra.mxu0 0.0
        %330 = vmatpush.msra.mxu0 0.0
        %331 = vmatpush.msra.mxu0 0.0
        %332 = vmatpush.msra.mxu0 0.0
        %333 = vmatpush.msra.mxu0 0.0
        %334 = vmatpush.msra.mxu0 0.0
        %335 = vmatpush.msra.mxu0 0.0
        %336 = vmatpush.msra.mxu0 0.0
        %337 = vmatpush.msra.mxu0 %v317
        %338 = vmatmul.f32.gmra.mxu0 %v320
        %v339 = vpop.f32.mrf.mxu0
        %v340 = vadd.f32 0.0, %v339
        %341 = vdwg.mxu0
        %v342 = vadd.f32 %v304, %v340
        %v343 = vld [vmem:[%s2] sm:$0xff]
        %345 = vset.pattern.permute.xlu0 0
        %346 = vperm.xlu0 %345, %v343
        %v347 = vpop.permute.xlu0 %346
        %v349 = vadd.f32 %v342, %v347
        %v350 = vadd.f32 %v349, %v243
        %vm351 = vcmp.gt.f32.partialorder %v350, 0.0
        %v352 = vmul.f32 %v350, 0.2
        %v353 = vsel %vm351, %v350, %v352
        %v354 = vpack.c.bf16 %v353, %v353
        %355 = vst [vmem:[%s232] sm:$0xf] %v354
        %356 = vadd.xlane.f32.xlu0 %v353
        %v357 = vpop.xlane.xlu0 %356
        %vm358 = vcmask 7168
        %359 = vst.msk [vmem:[%s242] sm:$0xff] %vm358, %v357
        %v360 = vmul.f32 %v353, %v353
        %361 = vadd.xlane.f32.xlu0 %v360
        %v362 = vpop.xlane.xlu0 %361
        %vm363 = vcmask 15368
        %364 = vst.msk [vmem:[%s242] sm:$0xff] %vm363, %v362
        %s365 = sand.u32 %s99, 1
        %s366 = scalar_lea.sflag [#allocation5], %s365
        %s367 = sand.u32 %s99, 1
        %s368 = smul.addr %s367, 4
        %s369 = scalar_lea.vmem [#allocation8], %s368
        %p370 = scmp.lt.s32.totalorder %s23, 1
        %s371 = scalar_select %p370, %s23, 1
        %s372 = smul.addr %s371, 8
        %s373 = scalar_lea.vmem %s4, %s372
        // Predicated region
        $region41: #{tpu_custom_call.1} parent=31 // pred_check
          %p374 = pneg %p109
        $region42: #{tpu_custom_call.1} parent=31 // pred_check_branch
          %376 = sbr.rel (%p374) target = $region44
        $region43: #{tpu_custom_call.1} parent=31 // pred_region
          %378 = vsyncadd %s366, 0
          %s379 = smul.addr %s23, 4
          %s380 = scalar_lea.hbm %s3, %s379
          %s382 = sshll.u32 %s369, 4
          %s383 = int_to_ptr.vmem [resolvable:$true] %s382
          %s384 = sshll.u32 %s380, 4
          %s385 = int_to_ptr.hbm [resolvable:$true] %s384
          %387 = dma.vmem_to_hbm [thread:$0]  %s383, 64, %s385, %s366
        $region44: #{tpu_custom_call.1} parent=31 // pred_fallthru
          _
        // Predicated region
        $region45: #{tpu_custom_call.1} parent=31 // pred_check
          %p388 = pneg %p135
        $region46: #{tpu_custom_call.1} parent=31 // pred_check_branch
          %390 = sbr.rel (%p388) target = $region48
        $region47: #{tpu_custom_call.1} parent=31 // pred_region
          _
        $region48: #{tpu_custom_call.1} parent=31 // pred_fallthru
          _
      $region32: #{tpu_custom_call.1} parent=5 // pred_fallthru
        _
      %p391 = scmp.le.s32.totalorder 2, %s18
      // Predicated region
      $region49: #{tpu_custom_call.1} parent=5 // pred_check
        %p392 = pneg %p391
      $region50: #{tpu_custom_call.1} parent=5 // pred_check_branch
        %394 = sbr.rel (%p392) target = $region52
      $region51: #{tpu_custom_call.1} parent=5 // pred_region
        %s395 = ssub.s32 %s18, 2
        // Predicated region
        $region53: #{tpu_custom_call.1} parent=51 // pred_check
          %p396 = pneg %p115
        $region54: #{tpu_custom_call.1} parent=51 // pred_check_branch
          %398 = sbr.rel (%p396) target = $region56
        $region55: #{tpu_custom_call.1} parent=51 // pred_region
          %s399 = sand.u32 %s100, 1
          %s400 = scalar_lea.sflag [#allocation5], %s399
          %s401 = sand.u32 %s100, 1
          %s402 = smul.addr %s401, 4
          %s403 = scalar_lea.vmem [#allocation8], %s402
          %405 = dma.done %s400, 64
        $region56: #{tpu_custom_call.1} parent=51 // pred_fallthru
          _
        // Predicated region
        $region57: #{tpu_custom_call.1} parent=51 // pred_check
          %p406 = pneg %p141
        $region58: #{tpu_custom_call.1} parent=51 // pred_check_branch
          %408 = sbr.rel (%p406) target = $region60
        $region59: #{tpu_custom_call.1} parent=51 // pred_region
          %p409 = scmp.lt.s32.totalorder %s24, 1
          %s410 = scalar_select %p409, %s24, 1
          %s411 = smul.addr %s410, 8
          %s412 = scalar_lea.vmem %s4, %s411
        $region60: #{tpu_custom_call.1} parent=51 // pred_fallthru
          _
      $region52: #{tpu_custom_call.1} parent=5 // pred_fallthru
        _
    $region6: #{tpu_custom_call.1} parent=1 // loop_footer
      %s22 = sadd.s32 1, %s18
    $region7: #{tpu_custom_call.1} parent=1 // loop_footer_branch
      %17 = sbr.rel target = $region3
    $region8: #{tpu_custom_call.1} parent=1 // loop_exit
      _
    %413 = vsyncpa [#allocation4], 1
    %s414 = scalar_lea.sflag [#allocation4], 1
    %415 = vsyncpa %s414, 1
    %416 = vsyncpa [#allocation7], 1
    %417 = vsyncpa [#allocation5], 1
    %s418 = scalar_lea.sflag [#allocation5], 1
    %419 = vsyncpa %s418, 1

</llo_original>
